<compile_context>
chip_gen: v7x
topology: tpu7x:2x2x1
jax: 0.10.0
libtpu: 0.0.40
codegen_flags: <defaults>
</compile_context>

<pallas_src>
import numpy as np
import jax
import jax.numpy as jnp
from jax.experimental import pallas as pl
from jax.experimental.pallas import tpu as pltpu


# ---------------------------------------------------------------------------
# Kernels
# ---------------------------------------------------------------------------

def _freq_loss_kernel_mono(x_ref, y_ref, f2d_ref, o_ref):
    """Monolithic 2-D rDFT: one bf16 MXU matmul per block.

    x_ref/y_ref: (1, tb, h*w)   f2d_ref: (h*w, 2*h*(w//2+1)) bf16
    o_ref: (1, 1, 2*h*(w//2+1)) f32 partial sum of squared Re/Im bins.
    """
    d = x_ref[0].astype(jnp.float32) - y_ref[0].astype(jnp.float32)   # (tb, hw) f32
    r = jnp.dot(d.astype(jnp.bfloat16), f2d_ref[...],
                preferred_element_type=jnp.float32)                   # (tb, lanes) f32
    o_ref[...] = jnp.sum(r * r, axis=0, keepdims=True)[None]          # (1, 1, lanes)


def _freq_loss_kernel_sep(x_ref, y_ref, fwr_ref, fwi_ref, fht_ref, fhb_ref, o_ref):
    """Separable 2-D rDFT for large images (two MXU stages, no lane slices/concats).

    x_ref/y_ref: (1, tb, h, w); fwr/fwi: (w, w//2+1); fht/fhb: (h, 2h); o: (1, 1, 2h).
    """
    _, tb, h, w = x_ref.shape
    kcw = fwr_ref.shape[1]

    d = x_ref[0].astype(jnp.float32) - y_ref[0].astype(jnp.float32)   # (tb, h, w) f32
    d = d.reshape(tb * h, w).astype(jnp.bfloat16)

    # Stage 1: W-axis rDFT as two separate dots (no lane-slice of a fused result).
    tr = jnp.dot(d, fwr_ref[...], preferred_element_type=jnp.float32)  # (tb*h, kcw)
    ti = jnp.dot(d, fwi_ref[...], preferred_element_type=jnp.float32)

    # Per-image transpose so H becomes the contraction axis (XLU slot).
    tr = jnp.transpose(tr.reshape(tb, h, kcw), (0, 2, 1)).reshape(tb * kcw, h)
    ti = jnp.transpose(ti.reshape(tb, h, kcw), (0, 2, 1)).reshape(tb * kcw, h)

    # Stage 2: H-axis DFT; complex combine as two accumulated dots (no lane concat):
    #   [re | im] = tr @ [Hr | Hi] + ti @ [-Hi | Hr]
    r = (jnp.dot(tr.astype(jnp.bfloat16), fht_ref[...], preferred_element_type=jnp.float32)
         + jnp.dot(ti.astype(jnp.bfloat16), fhb_ref[...], preferred_element_type=jnp.float32))

    o_ref[...] = jnp.sum(r * r, axis=0, keepdims=True)[None]           # (1, 1, 2h)


# ---------------------------------------------------------------------------
# Host-side DFT operand construction (float64, then cast to bf16)
# ---------------------------------------------------------------------------

def _dft_real_imag(n):
    """Re/Im of the full unnormalized n x n DFT matrix exp(-2*pi*i*u*k/n)."""
    k = np.arange(n, dtype=np.int64)
    phase = (k[:, None] * k[None, :]) % n
    ang = (-2.0 * np.pi / n) * phase.astype(np.float64)
    return np.cos(ang), np.sin(ang)


def _rdft_real_imag(n):
    """Re/Im of the n x (n//2+1) rDFT matrix.

    Mirrored-frequency columns are pre-scaled by sqrt(2) so that the sum of |X|^2
    over the kept columns equals the full-spectrum sum for real input.
    """
    k = np.arange(n, dtype=np.int64)
    kc = n // 2 + 1
    v = np.arange(kc, dtype=np.int64)
    phase = (k[:, None] * v[None, :]) % n
    ang = (-2.0 * np.pi / n) * phase.astype(np.float64)
    wgt = np.full((kc,), np.sqrt(2.0))
    wgt[0] = 1.0
    if n % 2 == 0:
        wgt[-1] = 1.0        # Nyquist column is self-conjugate -> weight 1
    return np.cos(ang) * wgt, np.sin(ang) * wgt


# ---------------------------------------------------------------------------
# Wrapper
# ---------------------------------------------------------------------------

def _const_spec(shape):
    """BlockSpec for a grid-invariant operand; single-buffered when supported."""
    idx = lambda i, _n=len(shape): (0,) * _n
    try:
        return pl.BlockSpec(shape, idx, pipeline_mode=pl.Buffered(1))
    except Exception:                               # older API: fall back to default
        return pl.BlockSpec(shape, idx)


def _largest_divisor_leq(n, cap):
    cap = int(max(1, min(cap, n)))
    for t in range(cap, 0, -1):
        if n % t == 0:
            return t
    return 1


def _vmem_budget_bytes():
    try:
        cap = int(pltpu.get_tpu_info().vmem_capacity_bytes)
    except Exception:
        cap = 64 * 1024 * 1024          # v7x per-TensorCore VMEM (most conservative)
    # ~70% of physical VMEM, capped: ~45 MiB on v7x, ~90 MiB on v5e/v6e.
    return min(int(cap * 0.7), 96 * 1024 * 1024)


def frequency_loss(x, y):
    """Pallas equivalent of FrequencyLoss.forward(x, y) = 100 * mse(fft2(x), fft2(y))."""
    assert x.shape == y.shape and x.ndim == 4
    n, c, h, w = x.shape
    b = n * c
    hw = h * w
    kcw = w // 2 + 1

    # Stream bf16 inputs as-is (halves HBM traffic); everything else goes f32.
    work_dtype = jnp.bfloat16 if x.dtype == jnp.bfloat16 else jnp.float32
    in_bytes = jnp.dtype(work_dtype).itemsize

    budget = _vmem_budget_bytes()
    # Monolithic 2-D DFT operand must stay comfortably inside VMEM on every chip.
    monolithic = (hw * (2 * h * kcw) * 2 <= 12 * 1024 * 1024) and hw <= 4096

    if monolithic:
        lanes = 2 * h * kcw
        const_bytes = hw * lanes * 2                      # bf16 F2D
        per_image = (2 * 2 * hw * in_bytes                # x, y blocks (double-buffered)
                     + hw * (4 + 2)                       # d in f32 + bf16
                     + lanes * (4 + 4))                   # r + r*r in f32
    else:
        lanes = 2 * h
        const_bytes = (2 * w * kcw + 4 * h * h) * 2       # bf16 Fw_{re,im}, Fh_{top,bot}
        per_image = (2 * 2 * hw * in_bytes
                     + hw * (4 + 2)                       # d in f32 + bf16
                     + 4 * h * kcw * (4 + 4 + 2)          # tr/ti + transposed + bf16
                     + 2 * h * kcw * (4 + 4))             # r + r*r
    tb_max = max(1, (budget - 2 * const_bytes - (1 << 20)) // per_image)
    tb_max = min(tb_max, max(1, -(-b // 4)))  # >= ~4 blocks: pipelining + v7x's 2 TCs
    tb = _largest_divisor_leq(b, tb_max)      # tb | b  -> no wrapper-side padding copy
    num_blocks = b // tb

    xf = x.astype(work_dtype)
    yf = y.astype(work_dtype)

    if monolithic:
        # Fused 2-D rDFT operand: F2D[(i,j),(u,v)] = F_H[i,u] * F_Wr[j,v].
        hr, hi = _dft_real_imag(h)
        wr, wi = _rdft_real_imag(w)
        f2d_re = np.kron(hr, wr) - np.kron(hi, wi)        # (h*w, h*kcw)
        f2d_im = np.kron(hr, wi) + np.kron(hi, wr)
        f2d = jnp.asarray(np.concatenate([f2d_re, f2d_im], axis=1), jnp.bfloat16)
        ops = (xf.reshape(num_blocks, tb, hw), yf.reshape(num_blocks, tb, hw), f2d)
        kernel = _freq_loss_kernel_mono
        in_specs = [
            pl.BlockSpec((1, tb, hw), lambda i: (i, 0, 0)),
            pl.BlockSpec((1, tb, hw), lambda i: (i, 0, 0)),
            _const_spec((hw, lanes)),
        ]
        flops = 2 * b * hw * lanes
    else:
        wr, wi = _rdft_real_imag(w)
        hr, hi = _dft_real_imag(h)
        fwr = jnp.asarray(wr, jnp.bfloat16)                                # (w, kcw)
        fwi = jnp.asarray(wi, jnp.bfloat16)
        fht = jnp.asarray(np.concatenate([hr, hi], axis=1), jnp.bfloat16)  # (h, 2h)
        fhb = jnp.asarray(np.concatenate([-hi, hr], axis=1), jnp.bfloat16)
        ops = (xf.reshape(num_blocks, tb, h, w), yf.reshape(num_blocks, tb, h, w),
               fwr, fwi, fht, fhb)
        kernel = _freq_loss_kernel_sep
        in_specs = [
            pl.BlockSpec((1, tb, h, w), lambda i: (i, 0, 0, 0)),
            pl.BlockSpec((1, tb, h, w), lambda i: (i, 0, 0, 0)),
            _const_spec((w, kcw)),
            _const_spec((w, kcw)),
            _const_spec((h, 2 * h)),
            _const_spec((h, 2 * h)),
        ]
        flops = b * (4 * hw * kcw + 8 * h * h * kcw)

    cost = pl.CostEstimate(
        flops=int(flops), transcendentals=0,
        bytes_accessed=int(2 * b * hw * in_bytes + const_bytes + num_blocks * lanes * 4))

    partials = pl.pallas_call(
        kernel,
        out_shape=jax.ShapeDtypeStruct((num_blocks, 1, lanes), jnp.float32),
        grid_spec=pltpu.PrefetchScalarGridSpec(
            num_scalar_prefetch=0,
            grid=(num_blocks,),
            in_specs=in_specs,
            out_specs=pl.BlockSpec((1, 1, lanes), lambda i: (i, 0, 0)),
        ),
        compiler_params=pltpu.CompilerParams(
            # Independent per-block partial sums -> fully parallel grid axis
            # (lets v7x's two TensorCores split the batch; harmless on v5e/v6e).
            dimension_semantics=("parallel",),
            vmem_limit_bytes=int(budget),
        ),
        cost_estimate=cost,
    )(*ops)

    # mean over the N*C*H*W complex frequency bins, scaled by 100
    total = jnp.sum(partials, dtype=jnp.float32)
    return total * (100.0 / float(b * hw))


def frequency_loss_ref(x, y):
    fx = jnp.fft.fft2(x, axes=(-2, -1))
    fy = jnp.fft.fft2(y, axes=(-2, -1))
    d = fx - fy
    return jnp.mean(d.real ** 2 + d.imag ** 2) * 100.0


if __name__ == "__main__":
    key = jax.random.PRNGKey(0)
    kx, ky = jax.random.split(key)
    N, C, H, W = 2, 4, 16, 16
    x = jax.random.normal(kx, (N, C, H, W), dtype=jnp.float32)
    y = jax.random.normal(ky, (N, C, H, W), dtype=jnp.float32)

    out = jax.block_until_ready(frequency_loss(x, y))
    ref = jax.block_until_ready(frequency_loss_ref(x, y))

    np.testing.assert_allclose(np.asarray(out), np.asarray(ref),
                               rtol=2e-3, atol=1e-3)
    print("KERNEL_OK")
</pallas_src>

<mosaic_0001>
module attributes {stable_mosaic.version = 11 : i64} {
  func.func @_freq_loss_kernel_mono(%arg0: i32, %arg1: memref<1x2x256xf32, #tpu.memory_space<vmem>>, %arg2: memref<1x2x256xf32, #tpu.memory_space<vmem>>, %arg3: memref<256x288xbf16, #tpu.memory_space<vmem>>, %arg4: memref<1x1x288xf32, #tpu.memory_space<vmem>>) attributes {dimension_semantics = [#tpu.dimension_semantics<parallel>], iteration_bounds = array<i64: 4>, scalar_prefetch = 0 : i64, scratch_operands = 0 : i64, tpu.core_type = #tpu.core_type<tc>, window_params = [{transform_indices = @transform_0, window_bounds = array<i64: 1, 2, 256>}, {transform_indices = @transform_1, window_bounds = array<i64: 1, 2, 256>}, {pipeline_mode = #tpu.pipeline_mode<synchronous>, transform_indices = @transform_2, window_bounds = array<i64: 256, 288>}, {transform_indices = @transform_3, window_bounds = array<i64: 1, 1, 288>}]} {
    %c0 = arith.constant 0 : index
    %c0_0 = arith.constant 0 : index
    %c0_1 = arith.constant 0 : index
    %0 = vector.load %arg1[%c0, %c0_0, %c0_1] : memref<1x2x256xf32, #tpu.memory_space<vmem>>, vector<1x2x256xf32>
    %1 = vector.shape_cast %0 : vector<1x2x256xf32> to vector<2x256xf32>
    %c0_2 = arith.constant 0 : index
    %c0_3 = arith.constant 0 : index
    %c0_4 = arith.constant 0 : index
    %2 = vector.load %arg2[%c0_2, %c0_3, %c0_4] : memref<1x2x256xf32, #tpu.memory_space<vmem>>, vector<1x2x256xf32>
    %3 = vector.shape_cast %2 : vector<1x2x256xf32> to vector<2x256xf32>
    %4 = arith.subf %1, %3 : vector<2x256xf32>
    %5 = arith.truncf %4 : vector<2x256xf32> to vector<2x256xbf16>
    %c0_5 = arith.constant 0 : index
    %c0_6 = arith.constant 0 : index
    %6 = vector.load %arg3[%c0_5, %c0_6] : memref<256x288xbf16, #tpu.memory_space<vmem>>, vector<256x288xbf16>
    %cst = arith.constant dense<0.000000e+00> : vector<2x288xf32>
    %7 = tpu.matmul %5, %6, %cst {dimension_numbers = #tpu.dot_dimension_numbers<[1], [0], [0], [1], [0, 0, 1, 1], [], []>} : vector<2x256xbf16>, vector<256x288xbf16>, vector<2x288xf32> -> vector<2x288xf32>
    %8 = arith.mulf %7, %7 : vector<2x288xf32>
    %cst_7 = arith.constant dense<0.000000e+00> : vector<288xf32>
    %9 = vector.multi_reduction <add>, %8, %cst_7 [0] : vector<2x288xf32> to vector<288xf32>
    %10 = vector.shape_cast %9 : vector<288xf32> to vector<1x288xf32>
    %11 = vector.shape_cast %10 : vector<1x288xf32> to vector<1x1x288xf32>
    %c0_8 = arith.constant 0 : index
    %c0_9 = arith.constant 0 : index
    %c0_10 = arith.constant 0 : index
    %12 = vector.load %arg4[%c0_8, %c0_9, %c0_10] : memref<1x1x288xf32, #tpu.memory_space<vmem>>, vector<1x1x288xf32>
    tpu.vector_store %arg4[%c0_8, %c0_9, %c0_10], %11 {strides = array<i32>} : memref<1x1x288xf32, #tpu.memory_space<vmem>>, vector<1x1x288xf32>,
    return
  }
  func.func @transform_0(%arg0: i32) -> (i32, i32, i32) {
    %c0_i32 = arith.constant 0 : i32
    %c0_i32_0 = arith.constant 0 : i32
    %c0_i32_1 = arith.constant 0 : i32
    return %arg0, %c0_i32, %c0_i32_0 : i32, i32, i32
  }
  func.func @transform_1(%arg0: i32) -> (i32, i32, i32) {
    %c0_i32 = arith.constant 0 : i32
    %c0_i32_0 = arith.constant 0 : i32
    %c0_i32_1 = arith.constant 0 : i32
    return %arg0, %c0_i32, %c0_i32_0 : i32, i32, i32
  }
  func.func @transform_2(%arg0: i32) -> (i32, i32) {
    %c0_i32 = arith.constant 0 : i32
    %c0_i32_0 = arith.constant 0 : i32
    %c0_i32_1 = arith.constant 0 : i32
    return %c0_i32, %c0_i32_0 : i32, i32
  }
  func.func @transform_3(%arg0: i32) -> (i32, i32, i32) {
    %c0_i32 = arith.constant 0 : i32
    %c0_i32_0 = arith.constant 0 : i32
    %c0_i32_1 = arith.constant 0 : i32
    return %arg0, %c0_i32, %c0_i32_0 : i32, i32, i32
  }
}

</mosaic_0001>

<llo_original>
// kernel: tpu_custom_call.1
$region0: #{tpu_custom_call.1}
  #allocation0 [shape = 'u32[]', space=smem, size = 0x4, offset = 0x4, fixed_abs, tag = 'smem constant byte address 0x4 - core index']
  #allocation1 [shape = 'u32[144,128]{1,0:T(1,128)}', space=vmem, size = 0x12000, scoped, tag = 'internal scratch']
  %s0 = inlined_call_operand.vmem [shape: f32[4,2,256], index: 0, kind: input, shape index: {}]
  %s1 = inlined_call_operand.vmem [shape: f32[4,2,256], index: 1, kind: input, shape index: {}]
  %s2 = inlined_call_operand.vmem [shape: bf16[256,288], index: 2, kind: input, shape index: {}]
  %s3 = inlined_call_operand.hbm [shape: f32[4,1,288], index: 3, kind: output, shape index: {}]
  %s4 = sld [smem:[#allocation0]]
  $region45: #{tpu_custom_call.1} parent=0
    _
  %s6 = ssub.s32 1, %s4
  %s7 = scalar_select 0, %s6, %s4
  $region1: #{tpu_custom_call.1} parent=0
    #allocation2 [shape = 'u8[3072]{0}', space=vmem, size = 0xc00, scoped, tag = 'output window, operand 0']
    #allocation3 [shape = 's32[2]{0}', space=sflag, size = 0x8, scoped, tag = 'scoped memory for tpu_custom_call.1']
    %8 = vsyncpa [#allocation3], 0
    %s9 = scalar_lea.sflag [#allocation3], 1
    %10 = vsyncpa %s9, 0
    loop: start=0, step=1, limit=6
    $region2: #{tpu_custom_call.1} parent=1 // loop_pre_header
      _
    $region3: #{tpu_custom_call.1} parent=1 // loop_header
      %s12 = sphi 0, %s16
      %p13 = scmp.ge.s32.totalorder %s12, 6
      %s22 = sphi 0, %s24
      %s25 = sphi 0, %s22
      %s26 = sphi 0, %s25
      %s42 = sphi 0, %s26
      %s48 = sphi 0, %s50
      %s51 = sphi 0, %s48
      %s52 = sphi 0, %s51
      %s68 = sphi 0, %s52
      %s72 = sphi 0, %s72
      %s74 = sphi 0, %s72
      %s75 = sphi 0, %s74
      %s89 = sphi 0, %s75
      %s95 = sphi 0, %s97
      %s98 = sphi 0, %s95
      %s99 = sphi 0, %s98
      %s115 = sphi 0, %s99
    $region4: #{tpu_custom_call.1} parent=1 // loop_header_branch
      %15 = sbr.rel (%p13) target = $region8
    $region5: #{tpu_custom_call.1} parent=1 // loop_body
      %s17 = ssub.s32 %s12, 1
      %s18 = ssub.s32 %s12, 2
      %s19 = sadd.s32 %s12, 1
      %s20 = ssub.s32 %s12, %s19
      %p21 = scmp.eq.s32.totalorder %s20, 0
      %s23 = sadd.s32 %s22, 1
      %s24 = scalar_select %p21, %s22, %s23
      %p27 = pneg %p21
      %p28 = scmp.eq.s32.totalorder %s12, 3
      %p29 = por %p27, %p28
      %p30 = scmp.ne.s32.totalorder %s22, %s25
      %p31 = scmp.eq.s32.totalorder %s12, 0
      %p32 = por %p30, %p31
      %p33 = scmp.ne.s32.totalorder %s22, %s25
      %p34 = scmp.eq.s32.totalorder %s17, 3
      %p35 = por %p33, %p34
      %p36 = scmp.ne.s32.totalorder %s25, %s26
      %p37 = scmp.eq.s32.totalorder %s17, 0
      %p38 = por %p36, %p37
      %p39 = scmp.ne.s32.totalorder %s25, %s26
      %p40 = scmp.eq.s32.totalorder %s18, 3
      %p41 = por %p39, %p40
      %p43 = scmp.ne.s32.totalorder %s26, %s42
      %p44 = scmp.eq.s32.totalorder %s18, 0
      %p45 = por %p43, %p44
      %s46 = ssub.s32 %s12, %s19
      %p47 = scmp.eq.s32.totalorder %s46, 0
      %s49 = sadd.s32 %s48, 1
      %s50 = scalar_select %p47, %s48, %s49
      %p53 = pneg %p47
      %p54 = scmp.eq.s32.totalorder %s12, 3
      %p55 = por %p53, %p54
      %p56 = scmp.ne.s32.totalorder %s48, %s51
      %p57 = scmp.eq.s32.totalorder %s12, 0
      %p58 = por %p56, %p57
      %p59 = scmp.ne.s32.totalorder %s48, %s51
      %p60 = scmp.eq.s32.totalorder %s17, 3
      %p61 = por %p59, %p60
      %p62 = scmp.ne.s32.totalorder %s51, %s52
      %p63 = scmp.eq.s32.totalorder %s17, 0
      %p64 = por %p62, %p63
      %p65 = scmp.ne.s32.totalorder %s51, %s52
      %p66 = scmp.eq.s32.totalorder %s18, 3
      %p67 = por %p65, %p66
      %p69 = scmp.ne.s32.totalorder %s52, %s68
      %p70 = scmp.eq.s32.totalorder %s18, 0
      %p71 = por %p69, %p70
      %s73 = sadd.s32 %s72, 1
      %p76 = scmp.eq.s32.totalorder %s12, 3
      %p77 = scmp.ne.s32.totalorder %s72, %s74
      %p78 = scmp.eq.s32.totalorder %s12, 0
      %p79 = por %p77, %p78
      %p80 = scmp.ne.s32.totalorder %s72, %s74
      %p81 = scmp.eq.s32.totalorder %s17, 3
      %p82 = por %p80, %p81
      %p83 = scmp.ne.s32.totalorder %s74, %s75
      %p84 = scmp.eq.s32.totalorder %s17, 0
      %p85 = por %p83, %p84
      %p86 = scmp.ne.s32.totalorder %s74, %s75
      %p87 = scmp.eq.s32.totalorder %s18, 3
      %p88 = por %p86, %p87
      %p90 = scmp.ne.s32.totalorder %s75, %s89
      %p91 = scmp.eq.s32.totalorder %s18, 0
      %p92 = por %p90, %p91
      %s93 = ssub.s32 %s12, %s19
      %p94 = scmp.eq.s32.totalorder %s93, 0
      %s96 = sadd.s32 %s95, 1
      %s97 = scalar_select %p94, %s95, %s96
      %p100 = pneg %p94
      %p101 = scmp.eq.s32.totalorder %s12, 3
      %p102 = por %p100, %p101
      %p103 = scmp.ne.s32.totalorder %s95, %s98
      %p104 = scmp.eq.s32.totalorder %s12, 0
      %p105 = por %p103, %p104
      %p106 = scmp.ne.s32.totalorder %s95, %s98
      %p107 = scmp.eq.s32.totalorder %s17, 3
      %p108 = por %p106, %p107
      %p109 = scmp.ne.s32.totalorder %s98, %s99
      %p110 = scmp.eq.s32.totalorder %s17, 0
      %p111 = por %p109, %p110
      %p112 = scmp.ne.s32.totalorder %s98, %s99
      %p113 = scmp.eq.s32.totalorder %s18, 3
      %p114 = por %p112, %p113
      %p116 = scmp.ne.s32.totalorder %s99, %s115
      %p117 = scmp.eq.s32.totalorder %s18, 0
      %p118 = por %p116, %p117
      %p119 = scmp.le.s32.totalorder 1, %s12
      %p120 = scmp.lt.s32.totalorder %s12, 5
      %p121 = pnand %p119, %p120
      %p122 = pneg %p121
      // Predicated region
      $region9: #{tpu_custom_call.1} parent=5 // pred_check
        _
      $region10: #{tpu_custom_call.1} parent=5 // pred_check_branch
        %124 = sbr.rel (%p121) target = $region12
      $region11: #{tpu_custom_call.1} parent=5 // pred_region
        %s125 = ssub.s32 %s12, 1
        // Predicated region
        $region13: #{tpu_custom_call.1} parent=11 // pred_check
          %p126 = pneg %p85
        $region14: #{tpu_custom_call.1} parent=11 // pred_check_branch
          %128 = sbr.rel (%p126) target = $region16
        $region15: #{tpu_custom_call.1} parent=11 // pred_region
          _
        $region16: #{tpu_custom_call.1} parent=11 // pred_fallthru
          _
      $region12: #{tpu_custom_call.1} parent=5 // pred_fallthru
        _
      %p129 = scmp.lt.s32.totalorder %s12, 4
      // Predicated region
      $region17: #{tpu_custom_call.1} parent=5 // pred_check
        %p130 = pneg %p129
      $region18: #{tpu_custom_call.1} parent=5 // pred_check_branch
        %132 = sbr.rel (%p130) target = $region20
      $region19: #{tpu_custom_call.1} parent=5 // pred_region
        // Predicated region
        $region21: #{tpu_custom_call.1} parent=19 // pred_check
          %p133 = pneg %p32
        $region22: #{tpu_custom_call.1} parent=19 // pred_check_branch
          %135 = sbr.rel (%p133) target = $region24
        $region23: #{tpu_custom_call.1} parent=19 // pred_region
          %p136 = scmp.lt.s32.totalorder %s12, 3
          %s137 = scalar_select %p136, %s12, 3
          %s138 = smul.addr %s137, 2
          %s139 = smul.addr %s138, 2
          %s140 = scalar_lea.vmem %s0, %s139
        $region24: #{tpu_custom_call.1} parent=19 // pred_fallthru
          _
        // Predicated region
        $region25: #{tpu_custom_call.1} parent=19 // pred_check
          %p141 = pneg %p58
        $region26: #{tpu_custom_call.1} parent=19 // pred_check_branch
          %143 = sbr.rel (%p141) target = $region28
        $region27: #{tpu_custom_call.1} parent=19 // pred_region
          %p144 = scmp.lt.s32.totalorder %s12, 3
          %s145 = scalar_select %p144, %s12, 3
          %s146 = smul.addr %s145, 2
          %s147 = smul.addr %s146, 2
          %s148 = scalar_lea.vmem %s1, %s147
        $region28: #{tpu_custom_call.1} parent=19 // pred_fallthru
          _
      $region20: #{tpu_custom_call.1} parent=5 // pred_fallthru
        _
      %p149 = scmp.le.s32.totalorder 1, %s12
      %p150 = scmp.lt.s32.totalorder %s12, 5
      %p151 = pnand %p149, %p150
      %p152 = pneg %p151
      // Predicated region
      $region29: #{tpu_custom_call.1} parent=5 // pred_check
        _
      $region30: #{tpu_custom_call.1} parent=5 // pred_check_branch
        %154 = sbr.rel (%p151) target = $region32
      $region31: #{tpu_custom_call.1} parent=5 // pred_region
        %s155 = ssub.s32 %s12, 1
        %p156 = scmp.lt.s32.totalorder %s17, 3
        %s157 = scalar_select %p156, %s17, 3
        %s158 = smul.addr %s157, 2
        %s159 = smul.addr %s158, 2
        %s160 = scalar_lea.vmem %s0, %s159
        %p161 = pneg %p38
        %p162 = pneg %p35
        %p163 = scmp.lt.s32.totalorder %s17, 3
        %s164 = scalar_select %p163, %s17, 3
        %s165 = smul.addr %s164, 2
        %s166 = smul.addr %s165, 2
        %s167 = scalar_lea.vmem %s1, %s166
        %p168 = pneg %p64
        %p169 = pneg %p61
        %p170 = pneg %p85
        %p171 = pneg %p82
        %p172 = pneg %p111
        %p173 = pneg %p108
        %s174 = sand.u32 %s98, 1
        %s175 = scalar_lea.sflag [#allocation3], %s174
        %s176 = sand.u32 %s98, 1
        %s177 = smul.addr %s176, 3
        %s178 = scalar_lea.vmem [#allocation2], %s177
        %p179 = scmp.lt.s32.totalorder %s17, 3
        %s180 = scalar_select %p179, %s17, 3
        %s181 = smul.addr %s180, 2
        %s182 = smul.addr %s181, 2
        %s183 = scalar_lea.vmem %s0, %s182
        %p184 = scmp.lt.s32.totalorder %s17, 3
        %s185 = scalar_select %p184, %s17, 3
        %s186 = smul.addr %s185, 2
        %s187 = smul.addr %s186, 2
        %s188 = scalar_lea.vmem %s1, %s187
        %v190 = vld [vmem:[%s183] sm:$0xf]
        %v191 = vld [vmem:[%s188] sm:$0xf]
        %v192 = vsub.f32 %v190, %v191
        %v195 = vunpack.c.l.s4 1983009808
        %v196 = vunpack.c.0.s8 %v195
        %v197 = vlaneseq
        %v198 = vshrl.u32 %v197, 7
        %v199 = vsub.s32 %v196, %v198
        %v200 = vrot.slane %v192, %v199
        %v201 = vcombine.high %v200, %v200
        %v204 = vpack.c.bf16 %v200, %v200
        %v205 = vpack.c.bf16 %v201, %v201
        %v206 = vld [vmem:[%s2] sm:$0xff]
        %v207 = vld [vmem:[%s2 + $0x8] sm:$0xf]
        %v208 = vld [vmem:[%s2 + $0xc] sm:$0xff]
        %v209 = vld [vmem:[%s2 + $0x14] sm:$0xf]
        %v210 = vld [vmem:[%s2 + $0x18] sm:$0xff]
        %v211 = vld [vmem:[%s2 + $0x20] sm:$0xf]
        %v212 = vld [vmem:[%s2 + $0x24] sm:$0xff]
        %v213 = vld [vmem:[%s2 + $0x2c] sm:$0xf]
        %v214 = vld [vmem:[%s2 + $0x30] sm:$0xff]
        %v215 = vld [vmem:[%s2 + $0x38] sm:$0xf]
        %v216 = vld [vmem:[%s2 + $0x3c] sm:$0xff]
        %v217 = vld [vmem:[%s2 + $0x44] sm:$0xf]
        %v218 = vld [vmem:[%s2 + $0x48] sm:$0xff]
        %v219 = vld [vmem:[%s2 + $0x50] sm:$0xf]
        %v220 = vld [vmem:[%s2 + $0x54] sm:$0xff]
        %v221 = vld [vmem:[%s2 + $0x5c] sm:$0xf]
        %v222 = vld [vmem:[%s2 + $0x60] sm:$0xff]
        %v223 = vld [vmem:[%s2 + $0x68] sm:$0xf]
        %v224 = vld [vmem:[%s2 + $0x6c] sm:$0xff]
        %v225 = vld [vmem:[%s2 + $0x74] sm:$0xf]
        %v226 = vld [vmem:[%s2 + $0x78] sm:$0xff]
        %v227 = vld [vmem:[%s2 + $0x80] sm:$0xf]
        %v228 = vld [vmem:[%s2 + $0x84] sm:$0xff]
        %v229 = vld [vmem:[%s2 + $0x8c] sm:$0xf]
        %v230 = vld [vmem:[%s2 + $0x90] sm:$0xff]
        %v231 = vld [vmem:[%s2 + $0x98] sm:$0xf]
        %v232 = vld [vmem:[%s2 + $0x9c] sm:$0xff]
        %v233 = vld [vmem:[%s2 + $0xa4] sm:$0xf]
        %v234 = vld [vmem:[%s2 + $0xa8] sm:$0xff]
        %v235 = vld [vmem:[%s2 + $0xb0] sm:$0xf]
        %v236 = vld [vmem:[%s2 + $0xb4] sm:$0xff]
        %v237 = vld [vmem:[%s2 + $0xbc] sm:$0xf]
        %v238 = vld [vmem:[%s2 + $0xc0] sm:$0xff]
        %v239 = vld [vmem:[%s2 + $0xc8] sm:$0xf]
        %v240 = vld [vmem:[%s2 + $0xcc] sm:$0xff]
        %v241 = vld [vmem:[%s2 + $0xd4] sm:$0xf]
        %v242 = vld [vmem:[%s2 + $0xd8] sm:$0xff]
        %v243 = vld [vmem:[%s2 + $0xe0] sm:$0xf]
        %v244 = vld [vmem:[%s2 + $0xe4] sm:$0xff]
        %v245 = vld [vmem:[%s2 + $0xec] sm:$0xf]
        %v246 = vld [vmem:[%s2 + $0xf0] sm:$0xff]
        %v247 = vld [vmem:[%s2 + $0xf8] sm:$0xf]
        %v248 = vld [vmem:[%s2 + $0xfc] sm:$0xff]
        %v249 = vld [vmem:[%s2 + $0x104] sm:$0xf]
        %v250 = vld [vmem:[%s2 + $0x108] sm:$0xff]
        %v251 = vld [vmem:[%s2 + $0x110] sm:$0xf]
        %v252 = vld [vmem:[%s2 + $0x114] sm:$0xff]
        %v253 = vld [vmem:[%s2 + $0x11c] sm:$0xf]
        %v254 = vld [vmem:[%s2 + $0x120] sm:$0xff]
        %v255 = vld [vmem:[%s2 + $0x128] sm:$0xf]
        %v256 = vld [vmem:[%s2 + $0x12c] sm:$0xff]
        %v257 = vld [vmem:[%s2 + $0x134] sm:$0xf]
        %v258 = vld [vmem:[%s2 + $0x138] sm:$0xff]
        %v259 = vld [vmem:[%s2 + $0x140] sm:$0xf]
        %v260 = vld [vmem:[%s2 + $0x144] sm:$0xff]
        %v261 = vld [vmem:[%s2 + $0x14c] sm:$0xf]
        %v262 = vld [vmem:[%s2 + $0x150] sm:$0xff]
        %v263 = vld [vmem:[%s2 + $0x158] sm:$0xf]
        %v264 = vld [vmem:[%s2 + $0x15c] sm:$0xff]
        %v265 = vld [vmem:[%s2 + $0x164] sm:$0xf]
        %v266 = vld [vmem:[%s2 + $0x168] sm:$0xff]
        %v267 = vld [vmem:[%s2 + $0x170] sm:$0xf]
        %v268 = vld [vmem:[%s2 + $0x174] sm:$0xff]
        %v269 = vld [vmem:[%s2 + $0x17c] sm:$0xf]
        %v334 = vunpack.c.l.b16 %v206
        %v335 = vunpack.c.h.b16 %v206
        %v336 = vunpack.c.l.b16 %v207
        %v337 = vunpack.c.l.b16 %v208
        %v338 = vunpack.c.h.b16 %v208
        %v339 = vunpack.c.l.b16 %v209
        %v340 = vunpack.c.l.b16 %v210
        %v341 = vunpack.c.h.b16 %v210
        %v342 = vunpack.c.l.b16 %v211
        %v343 = vunpack.c.l.b16 %v212
        %v344 = vunpack.c.h.b16 %v212
        %v345 = vunpack.c.l.b16 %v213
        %v346 = vunpack.c.l.b16 %v214
        %v347 = vunpack.c.h.b16 %v214
        %v348 = vunpack.c.l.b16 %v215
        %v349 = vunpack.c.l.b16 %v216
        %v350 = vunpack.c.h.b16 %v216
        %v351 = vunpack.c.l.b16 %v217
        %v352 = vunpack.c.l.b16 %v218
        %v353 = vunpack.c.h.b16 %v218
        %v354 = vunpack.c.l.b16 %v219
        %v355 = vunpack.c.l.b16 %v220
        %v356 = vunpack.c.h.b16 %v220
        %v357 = vunpack.c.l.b16 %v221
        %v358 = vunpack.c.l.b16 %v222
        %v359 = vunpack.c.h.b16 %v222
        %v360 = vunpack.c.l.b16 %v223
        %v361 = vunpack.c.l.b16 %v224
        %v362 = vunpack.c.h.b16 %v224
        %v363 = vunpack.c.l.b16 %v225
        %v364 = vunpack.c.l.b16 %v226
        %v365 = vunpack.c.h.b16 %v226
        %v366 = vunpack.c.l.b16 %v227
        %v367 = vunpack.c.l.b16 %v228
        %v368 = vunpack.c.h.b16 %v228
        %v369 = vunpack.c.l.b16 %v229
        %v370 = vunpack.c.l.b16 %v230
        %v371 = vunpack.c.h.b16 %v230
        %v372 = vunpack.c.l.b16 %v231
        %v373 = vunpack.c.l.b16 %v232
        %v374 = vunpack.c.h.b16 %v232
        %v375 = vunpack.c.l.b16 %v233
        %v376 = vunpack.c.l.b16 %v234
        %v377 = vunpack.c.h.b16 %v234
        %v378 = vunpack.c.l.b16 %v235
        %v379 = vunpack.c.l.b16 %v236
        %v380 = vunpack.c.h.b16 %v236
        %v381 = vunpack.c.l.b16 %v237
        %v382 = vunpack.c.l.b16 %v238
        %v383 = vunpack.c.h.b16 %v238
        %v384 = vunpack.c.l.b16 %v239
        %v385 = vunpack.c.l.b16 %v240
        %v386 = vunpack.c.h.b16 %v240
        %v387 = vunpack.c.l.b16 %v241
        %v388 = vunpack.c.l.b16 %v242
        %v389 = vunpack.c.h.b16 %v242
        %v390 = vunpack.c.l.b16 %v243
        %v391 = vunpack.c.l.b16 %v244
        %v392 = vunpack.c.h.b16 %v244
        %v393 = vunpack.c.l.b16 %v245
        %v394 = vunpack.c.l.b16 %v246
        %v395 = vunpack.c.h.b16 %v246
        %v396 = vunpack.c.l.b16 %v247
        %v397 = vunpack.c.l.b16 %v248
        %v398 = vunpack.c.h.b16 %v248
        %v399 = vunpack.c.l.b16 %v249
        %v400 = vunpack.c.l.b16 %v250
        %v401 = vunpack.c.h.b16 %v250
        %v402 = vunpack.c.l.b16 %v251
        %v403 = vunpack.c.l.b16 %v252
        %v404 = vunpack.c.h.b16 %v252
        %v405 = vunpack.c.l.b16 %v253
        %v406 = vunpack.c.l.b16 %v254
        %v407 = vunpack.c.h.b16 %v254
        %v408 = vunpack.c.l.b16 %v255
        %v409 = vunpack.c.l.b16 %v256
        %v410 = vunpack.c.h.b16 %v256
        %v411 = vunpack.c.l.b16 %v257
        %v412 = vunpack.c.l.b16 %v258
        %v413 = vunpack.c.h.b16 %v258
        %v414 = vunpack.c.l.b16 %v259
        %v415 = vunpack.c.l.b16 %v260
        %v416 = vunpack.c.h.b16 %v260
        %v417 = vunpack.c.l.b16 %v261
        %v418 = vunpack.c.l.b16 %v262
        %v419 = vunpack.c.h.b16 %v262
        %v420 = vunpack.c.l.b16 %v263
        %v421 = vunpack.c.l.b16 %v264
        %v422 = vunpack.c.h.b16 %v264
        %v423 = vunpack.c.l.b16 %v265
        %v424 = vunpack.c.l.b16 %v266
        %v425 = vunpack.c.h.b16 %v266
        %v426 = vunpack.c.l.b16 %v267
        %v427 = vunpack.c.l.b16 %v268
        %v428 = vunpack.c.h.b16 %v268
        %v429 = vunpack.c.l.b16 %v269
        %v430 = vpack.c.b16 %v337, %v334
        %v431 = vpack.c.b16 %v338, %v335
        %v432 = vpack.c.b16 %v339, %v336
        %v433 = vpack.c.b16 %v343, %v340
        %v434 = vpack.c.b16 %v344, %v341
        %v435 = vpack.c.b16 %v345, %v342
        %v436 = vpack.c.b16 %v349, %v346
        %v437 = vpack.c.b16 %v350, %v347
        %v438 = vpack.c.b16 %v351, %v348
        %v439 = vpack.c.b16 %v355, %v352
        %v440 = vpack.c.b16 %v356, %v353
        %v441 = vpack.c.b16 %v357, %v354
        %v442 = vpack.c.b16 %v361, %v358
        %v443 = vpack.c.b16 %v362, %v359
        %v444 = vpack.c.b16 %v363, %v360
        %v445 = vpack.c.b16 %v367, %v364
        %v446 = vpack.c.b16 %v368, %v365
        %v447 = vpack.c.b16 %v369, %v366
        %v448 = vpack.c.b16 %v373, %v370
        %v449 = vpack.c.b16 %v374, %v371
        %v450 = vpack.c.b16 %v375, %v372
        %v451 = vpack.c.b16 %v379, %v376
        %v452 = vpack.c.b16 %v380, %v377
        %v453 = vpack.c.b16 %v381, %v378
        %v454 = vpack.c.b16 %v385, %v382
        %v455 = vpack.c.b16 %v386, %v383
        %v456 = vpack.c.b16 %v387, %v384
        %v457 = vpack.c.b16 %v391, %v388
        %v458 = vpack.c.b16 %v392, %v389
        %v459 = vpack.c.b16 %v393, %v390
        %v460 = vpack.c.b16 %v397, %v394
        %v461 = vpack.c.b16 %v398, %v395
        %v462 = vpack.c.b16 %v399, %v396
        %v463 = vpack.c.b16 %v403, %v400
        %v464 = vpack.c.b16 %v404, %v401
        %v465 = vpack.c.b16 %v405, %v402
        %v466 = vpack.c.b16 %v409, %v406
        %v467 = vpack.c.b16 %v410, %v407
        %v468 = vpack.c.b16 %v411, %v408
        %v469 = vpack.c.b16 %v415, %v412
        %v470 = vpack.c.b16 %v416, %v413
        %v471 = vpack.c.b16 %v417, %v414
        %v472 = vpack.c.b16 %v421, %v418
        %v473 = vpack.c.b16 %v422, %v419
        %v474 = vpack.c.b16 %v423, %v420
        %v475 = vpack.c.b16 %v427, %v424
        %v476 = vpack.c.b16 %v428, %v425
        %v477 = vpack.c.b16 %v429, %v426
        %526 = vmatprep.subr.bf16.mxu0 %v431
        %527 = vmatpush1.bf16.msra.mxu0 %v430
        %528 = vmatprep.subr.bf16.mxu0 %v434
        %529 = vmatpush1.bf16.msra.mxu0 %v433
        %530 = vmatprep.subr.bf16.mxu0 %v437
        %531 = vmatpush1.bf16.msra.mxu0 %v436
        %532 = vmatprep.subr.bf16.mxu0 %v440
        %533 = vmatpush1.bf16.msra.mxu0 %v439
        %534 = vmatprep.subr.bf16.mxu0 %v443
        %535 = vmatpush1.bf16.msra.mxu0 %v442
        %536 = vmatprep.subr.bf16.mxu0 %v446
        %537 = vmatpush1.bf16.msra.mxu0 %v445
        %538 = vmatprep.subr.bf16.mxu0 %v449
        %539 = vmatpush1.bf16.msra.mxu0 %v448
        %540 = vmatprep.subr.bf16.mxu0 %v452
        %541 = vmatpush1.bf16.msra.mxu0 %v451
        %542 = vmatprep.subr.bf16.mxu0 %v455
        %543 = vmatpush1.bf16.msra.mxu0 %v454
        %544 = vmatprep.subr.bf16.mxu0 %v458
        %545 = vmatpush1.bf16.msra.mxu0 %v457
        %546 = vmatprep.subr.bf16.mxu0 %v461
        %547 = vmatpush1.bf16.msra.mxu0 %v460
        %548 = vmatprep.subr.bf16.mxu0 %v464
        %549 = vmatpush1.bf16.msra.mxu0 %v463
        %550 = vmatprep.subr.bf16.mxu0 %v467
        %551 = vmatpush1.bf16.msra.mxu0 %v466
        %552 = vmatprep.subr.bf16.mxu0 %v470
        %553 = vmatpush1.bf16.msra.mxu0 %v469
        %554 = vmatprep.subr.bf16.mxu0 %v473
        %555 = vmatpush1.bf16.msra.mxu0 %v472
        %556 = vmatprep.subr.bf16.mxu0 %v476
        %557 = vmatpush1.bf16.msra.mxu0 %v475
        %558 = vmatprep.mubr.bf16.mxu0 %v205
        %559 = vmatmul.mubr.bf16.gmra.mrb[0].mxu0 %v204
        %v560 = vpop.f32.mrb[0].mxu0
        %v561 = vadd.f32 0.0, %v560
        %v562 = vpop.f32.mrb[0].mxu0
        %v563 = vadd.f32 0.0, %v562
        %v564 = vpop.f32.mrb[0].mxu0
        %v565 = vpop.f32.mrb[0].mxu0
        %566 = vdwg.mxu0
        %567 = vmatprep.subr.bf16.mxu0 0
        %568 = vmatpush1.bf16.msra.mxu0 %v432
        %569 = vmatprep.subr.bf16.mxu0 0
        %570 = vmatpush1.bf16.msra.mxu0 %v435
        %571 = vmatprep.subr.bf16.mxu0 0
        %572 = vmatpush1.bf16.msra.mxu0 %v438
        %573 = vmatprep.subr.bf16.mxu0 0
        %574 = vmatpush1.bf16.msra.mxu0 %v441
        %575 = vmatprep.subr.bf16.mxu0 0
        %576 = vmatpush1.bf16.msra.mxu0 %v444
        %577 = vmatprep.subr.bf16.mxu0 0
        %578 = vmatpush1.bf16.msra.mxu0 %v447
        %579 = vmatprep.subr.bf16.mxu0 0
        %580 = vmatpush1.bf16.msra.mxu0 %v450
        %581 = vmatprep.subr.bf16.mxu0 0
        %582 = vmatpush1.bf16.msra.mxu0 %v453
        %583 = vmatprep.subr.bf16.mxu0 0
        %584 = vmatpush1.bf16.msra.mxu0 %v456
        %585 = vmatprep.subr.bf16.mxu0 0
        %586 = vmatpush1.bf16.msra.mxu0 %v459
        %587 = vmatprep.subr.bf16.mxu0 0
        %588 = vmatpush1.bf16.msra.mxu0 %v462
        %589 = vmatprep.subr.bf16.mxu0 0
        %590 = vmatpush1.bf16.msra.mxu0 %v465
        %591 = vmatprep.subr.bf16.mxu0 0
        %592 = vmatpush1.bf16.msra.mxu0 %v468
        %593 = vmatprep.subr.bf16.mxu0 0
        %594 = vmatpush1.bf16.msra.mxu0 %v471
        %595 = vmatprep.subr.bf16.mxu0 0
        %596 = vmatpush1.bf16.msra.mxu0 %v474
        %597 = vmatprep.subr.bf16.mxu0 0
        %598 = vmatpush1.bf16.msra.mxu0 %v477
        %599 = vmatprep.mubr.bf16.mxu0 %v205
        %600 = vmatmul.mubr.bf16.gmra.mrb[0].mxu0 %v204
        %v601 = vpop.f32.mrb[0].mxu0
        %v602 = vadd.f32 0.0, %v601
        %v603 = vpop.f32.mrb[0].mxu0
        %v604 = vpop.f32.mrb[0].mxu0
        %v605 = vpop.f32.mrb[0].mxu0
        %606 = vdwg.mxu0
        %v607 = vmul.f32 %v561, %v561
        %v608 = vmul.f32 %v563, %v563
        %v609 = vmul.f32 %v602, %v602
        %vm610 = vcmask 1041408
        %v611 = vsel %vm610, %v607, 0.0
        %v612 = vrot.slane %v611, 4
        %v613 = vadd.f32 %v611, %v612
        %v614 = vrot.slane %v613, 2
        %v615 = vadd.f32 %v613, %v614
        %v616 = vrot.slane %v615, 1
        %v617 = vadd.f32 %v615, %v616
        %v618 = vsel %vm610, %v608, 0.0
        %v619 = vrot.slane %v618, 4
        %v620 = vadd.f32 %v618, %v619
        %v621 = vrot.slane %v620, 2
        %v622 = vadd.f32 %v620, %v621
        %v623 = vrot.slane %v622, 1
        %v624 = vadd.f32 %v622, %v623
        %vm625 = vcmask 254976
        %v626 = vsel %vm625, %v609, 0.0
        %v627 = vrot.slane %v626, 4
        %v628 = vadd.f32 %v626, %v627
        %v629 = vrot.slane %v628, 2
        %v630 = vadd.f32 %v628, %v629
        %v631 = vrot.slane %v630, 1
        %v632 = vadd.f32 %v630, %v631
        %v636 = vcombine.low %v617, %v624
        %v638 = vunpack.c.l.s4 1966171168
        %v639 = vunpack.c.0.s8 %v638
        %v640 = vlaneseq
        %v641 = vshrl.u32 %v640, 7
        %v642 = vsub.s32 %v639, %v641
        %v643 = vrot.slane %v636, %v642
        %v645 = vunpack.c.l.s4 1966171168
        %v646 = vunpack.c.0.s8 %v645
        %v647 = vlaneseq
        %v648 = vshrl.u32 %v647, 7
        %v649 = vsub.s32 %v646, %v648
        %v650 = vrot.slane %v632, %v649
        %v651 = vcombine.low %v643, %v650
        %v653 = vunpack.c.l.s4 1966171168
        %v654 = vunpack.c.0.s8 %v653
        %v655 = vlaneseq
        %v656 = vshrl.u32 %v655, 7
        %v657 = vsub.s32 %v654, %v656
        %v658 = vrot.slane %v651, %v657
        %v660 = vlaneseq
        %vm661 = vcmp.ge.s32.totalorder %v660, 0
        %vm662 = vcmp.lt.s32.totalorder %v660, 288
        %vm663 = vmand %vm661, %vm662
        %664 = vst.msk [vmem:[%s178] sm:$0x7] %vm663, %v658
        %s665 = sand.u32 %s98, 1
        %s666 = scalar_lea.sflag [#allocation3], %s665
        %s667 = sand.u32 %s98, 1
        %s668 = smul.addr %s667, 3
        %s669 = scalar_lea.vmem [#allocation2], %s668
        // Predicated region
        $region33: #{tpu_custom_call.1} parent=31 // pred_check
          %p670 = pneg %p108
        $region34: #{tpu_custom_call.1} parent=31 // pred_check_branch
          %672 = sbr.rel (%p670) target = $region36
        $region35: #{tpu_custom_call.1} parent=31 // pred_region
          %s674 = ssub.s32 48, 48
          %675 = vsyncadd %s666, %s674
          %s676 = smul.addr %s17, 3
          %s677 = smul.addr %s676, 16
          %s678 = scalar_lea.hbm %s3, %s677
          %s680 = sshll.u32 %s669, 4
          %s681 = int_to_ptr.vmem [resolvable:$true] %s680
          %683 = dma.vmem_to_hbm [thread:$0]  %s681, 48, %s678, %s666
        $region36: #{tpu_custom_call.1} parent=31 // pred_fallthru
          _
      $region32: #{tpu_custom_call.1} parent=5 // pred_fallthru
        _
      %p684 = scmp.le.s32.totalorder 2, %s12
      // Predicated region
      $region37: #{tpu_custom_call.1} parent=5 // pred_check
        %p685 = pneg %p684
      $region38: #{tpu_custom_call.1} parent=5 // pred_check_branch
        %687 = sbr.rel (%p685) target = $region40
      $region39: #{tpu_custom_call.1} parent=5 // pred_region
        %s688 = ssub.s32 %s12, 2
        // Predicated region
        $region41: #{tpu_custom_call.1} parent=39 // pred_check
          %p689 = pneg %p114
        $region42: #{tpu_custom_call.1} parent=39 // pred_check_branch
          %691 = sbr.rel (%p689) target = $region44
        $region43: #{tpu_custom_call.1} parent=39 // pred_region
          %s692 = sand.u32 %s99, 1
          %s693 = scalar_lea.sflag [#allocation3], %s692
          %s694 = sand.u32 %s99, 1
          %s695 = smul.addr %s694, 3
          %s696 = scalar_lea.vmem [#allocation2], %s695
          %697 = dma.done %s693, 48
        $region44: #{tpu_custom_call.1} parent=39 // pred_fallthru
          _
      $region40: #{tpu_custom_call.1} parent=5 // pred_fallthru
        _
    $region6: #{tpu_custom_call.1} parent=1 // loop_footer
      %s16 = sadd.s32 1, %s12
    $region7: #{tpu_custom_call.1} parent=1 // loop_footer_branch
      %11 = sbr.rel target = $region3
    $region8: #{tpu_custom_call.1} parent=1 // loop_exit
      _
    %698 = vsyncpa [#allocation3], 1
    %s699 = scalar_lea.sflag [#allocation3], 1
    %700 = vsyncpa %s699, 1

</llo_original>
